<compile_context>
chip_gen: v7x
topology: tpu7x:2x2x1
jax: 0.10.0
libtpu: 0.0.40
codegen_flags: <defaults>
</compile_context>

<pallas_src>
import functools

import numpy as np

import jax
import jax.numpy as jnp
from jax.experimental import pallas as pl
from jax.experimental.pallas import tpu as pltpu


def _round_up(a: int, m: int) -> int:
    return (a + m - 1) // m * m


@functools.lru_cache(maxsize=None)
def _avg_band_np(seq_len: int, kernel_size: int, stride: int, tl: int,
                 l_out_pad: int, sub: int, l_pad: int, band: int) -> np.ndarray:
    """Band-compacted replicate-pad + AvgPool1d matrix, (l_out_pad, band) f32.

    Row r (< L_out) holds the 1/k tap weights of output step r; within row
    tile t the columns are shifted so column 0 corresponds to input row
    col0(t) = min(align_down(max(t*tl*stride - pad, 0), sub), l_pad - band).
    """
    pad = (kernel_size - 1) // 2
    l_out = (seq_len + 2 * pad - kernel_size) // stride + 1
    rows = np.arange(l_out)
    dense = np.zeros((l_out, seq_len), np.float32)
    for j in range(kernel_size):
        cols = np.clip(rows * stride + j - pad, 0, seq_len - 1)
        dense[rows, cols] += 1.0                      # row indices unique per tap
    dense /= np.float32(kernel_size)
    dense = np.pad(dense, ((0, l_out_pad - l_out), (0, l_pad - seq_len)))

    out = np.zeros((l_out_pad, band), np.float32)
    for t in range(l_out_pad // tl):
        c_min = max(t * tl * stride - pad, 0)
        col0 = min((c_min // sub) * sub, l_pad - band)
        out[t * tl:(t + 1) * tl, :] = dense[t * tl:(t + 1) * tl, col0:col0 + band]
    return out


def moving_avg(x: jax.Array, kernel_size: int, stride: int = 1) -> jax.Array:
    """Pallas equivalent of the PyTorch moving_avg module. x: (B, L, C)."""
    B, L, C = x.shape
    k, s = int(kernel_size), int(stride)
    pad = (k - 1) // 2
    L_out = (L + 2 * pad - k) // s + 1

    orig_dtype = x.dtype
    if x.dtype == jnp.bfloat16:
        dtype = jnp.bfloat16                          # native bf16 MXU path
    else:
        if x.dtype != jnp.float32:
            x = x.astype(jnp.float32)
        dtype = jnp.float32                           # exact f32 path
    itemsize = np.dtype(dtype).itemsize
    sub = max(8, 32 // itemsize)                      # sublane packing granule
    LANE = 128

    # ---- layout: lane-dense; skip the relayout when C already fits ---------
    direct = (C % LANE == 0) and (L % sub == 0)
    if direct:
        x3 = x                                        # (B, L, C) untouched
        Bo, Ndim, Lpad, N = B, C, L, C
    else:
        N = B * C
        Ndim = _round_up(N, LANE)
        Lpad = _round_up(L, sub)
        x2 = jnp.transpose(x, (1, 0, 2)).reshape(L, N)
        if Ndim != N or Lpad != L:
            x2 = jnp.pad(x2, ((0, Lpad - L), (0, Ndim - N)))
        x3 = x2.reshape(1, Lpad, Ndim)
        Bo = 1

    # ---- tile selection -----------------------------------------------------
    tn = 512 if Ndim % 512 == 0 else (256 if Ndim % 256 == 0 else LANE)
    if Ndim // tn == 1 and Ndim >= 2 * LANE:
        tn //= 2                                      # >=2 lane tiles for 2 TCs (v7x)
    while Lpad * tn * itemsize > (16 << 20) and tn > LANE:
        tn //= 2                                      # keep the resident X slab modest

    lo_r = _round_up(L_out, sub)
    if lo_r >= 512:
        tl = 256                                      # fuller M dim for 256-wide MXU
    elif lo_r > 256:
        tl = 128
    else:
        tl = lo_r                                     # single output-row tile
    l_out_pad = _round_up(L_out, tl)

    # ---- band-compacted averaging matrix (K dim = band, not L) -------------
    band_need = (tl - 1) * s + k + (sub - 1)
    band = min(_round_up(band_need, LANE), Lpad)
    a = jnp.asarray(_avg_band_np(L, k, s, tl, l_out_pad, sub, Lpad, band),
                    dtype=dtype)

    grid = (Bo, Ndim // tn, l_out_pad // tl)

    def kernel(a_ref, x_ref, o_ref):
        lt = pl.program_id(2)
        # Row tile of the fully-resident compact averaging matrix.
        if l_out_pad == tl:
            a_tile = a_ref[...]
        else:
            r0 = pl.multiple_of(lt * tl, tl)
            a_tile = a_ref[pl.ds(r0, tl), :]                  # (tl, band)
        # Matching column band of the resident X block (same col0 formula as
        # the trace-time compaction of A).
        if band == Lpad:
            x_band = x_ref[...]                               # dense fallback
        else:
            c_min = jnp.maximum(lt * (tl * s) - pad, 0)
            col0 = jnp.minimum((c_min // sub) * sub, Lpad - band)
            col0 = pl.multiple_of(col0, sub)
            x_band = x_ref[pl.ds(col0, band), :]              # (band, tn)
        o_ref[...] = jnp.dot(a_tile, x_band,
                             preferred_element_type=jnp.float32).astype(o_ref.dtype)

    a_bytes = l_out_pad * band * itemsize
    x_bytes = Lpad * tn * itemsize
    o_bytes = tl * tn * itemsize
    vmem_limit = int(min(64 << 20, max(32 << 20, 4 * (a_bytes + x_bytes + o_bytes))))

    out3 = pl.pallas_call(
        kernel,
        out_shape=jax.ShapeDtypeStruct((Bo, l_out_pad, Ndim), dtype),
        grid=grid,
        in_specs=[
            # Compact A: constant block index -> fetched from HBM once, resident.
            pl.BlockSpec((l_out_pad, band), lambda b, n, l: (0, 0)),
            # X slab: resident across the (innermost) seq-tile axis.
            pl.BlockSpec((pl.Squeezed(), Lpad, tn), lambda b, n, l: (b, 0, n)),
        ],
        out_specs=pl.BlockSpec((pl.Squeezed(), tl, tn), lambda b, n, l: (b, l, n)),
        compiler_params=pltpu.CompilerParams(
            dimension_semantics=("parallel", "parallel", "parallel"),
            vmem_limit_bytes=vmem_limit,
        ),
    )(a, x3)

    if direct:
        out = out3[:, :L_out, :]
    else:
        out = out3[0, :L_out, :N].reshape(L_out, B, C).transpose(1, 0, 2)
    if jnp.issubdtype(orig_dtype, jnp.floating) and out.dtype != orig_dtype:
        out = out.astype(orig_dtype)
    return out


def _reference(x, kernel_size, stride=1):
    # Pure-JAX mirror of the PyTorch module.
    pad = (kernel_size - 1) // 2
    front = jnp.repeat(x[:, 0:1, :], pad, axis=1)
    end = jnp.repeat(x[:, -1:, :], pad, axis=1)
    xp = jnp.concatenate([front, x, end], axis=1)              # (B, L+2p, C)
    l_out = (x.shape[1] + 2 * pad - kernel_size) // stride + 1
    windows = jnp.stack(
        [xp[:, i * stride:i * stride + kernel_size, :] for i in range(l_out)],
        axis=1)                                                # (B, L_out, k, C)
    return jnp.mean(windows.astype(jnp.float32), axis=2).astype(x.dtype)


if __name__ == "__main__":
    key = jax.random.PRNGKey(0)

    # 1) Small smoke test (single tile, f32, transpose path).
    B, L, C = 2, 16, 8
    x = jax.random.normal(key, (B, L, C), dtype=jnp.float32)
    out = moving_avg(x, 5, 1)
    jax.block_until_ready(out)
    ref = _reference(x, 5, 1)
    assert out.shape == ref.shape
    assert jnp.allclose(out, ref, atol=1e-5, rtol=1e-5)

    # 1b) Even kernel + stride > 1.
    out_b = moving_avg(x, 4, 2)
    ref_b = _reference(x, 4, 2)
    assert out_b.shape == ref_b.shape
    assert jnp.allclose(out_b, ref_b, atol=1e-5, rtol=1e-5)

    # 2) Multi-tile band-compacted path (2 seq tiles, 3 lane tiles, f32).
    x2 = jax.random.normal(jax.random.PRNGKey(1), (4, 512, 96), jnp.float32)
    out2 = moving_avg(x2, 25, 1)
    ref2 = _reference(x2, 25, 1)
    assert out2.shape == ref2.shape
    assert jnp.allclose(out2, ref2, atol=1e-4, rtol=1e-4)

    # 3) bf16 native-dtype MXU path + direct (no-relayout) layout.
    x3 = jax.random.normal(jax.random.PRNGKey(2), (2, 128, 128), jnp.bfloat16)
    out3 = moving_avg(x3, 25, 1)
    ref3 = _reference(x3, 25, 1)
    assert out3.shape == ref3.shape
    assert jnp.allclose(out3.astype(jnp.float32), ref3.astype(jnp.float32),
                        atol=3e-2, rtol=3e-2)

    jax.block_until_ready(out3)
    print("KERNEL_OK")
</pallas_src>

<mosaic_0001>
module attributes {stable_mosaic.version = 11 : i64} {
  func.func @kernel(%arg0: i32, %arg1: i32, %arg2: i32, %arg3: memref<16x16xf32, #tpu.memory_space<vmem>>, %arg4: memref<1x16x128xf32, #tpu.memory_space<vmem>>, %arg5: memref<1x16x128xf32, #tpu.memory_space<vmem>>) attributes {dimension_semantics = [#tpu.dimension_semantics<parallel>, #tpu.dimension_semantics<parallel>, #tpu.dimension_semantics<parallel>], iteration_bounds = array<i64: 1, 1, 1>, scalar_prefetch = 0 : i64, scratch_operands = 0 : i64, tpu.core_type = #tpu.core_type<tc>, window_params = [{pipeline_mode = #tpu.pipeline_mode<synchronous>, transform_indices = @transform_0, window_bounds = array<i64: 16, 16>}, {transform_indices = @transform_1, window_bounds = array<i64: 1, 16, 128>}, {transform_indices = @transform_2, window_bounds = array<i64: 1, 16, 128>}]} {
    %c0 = arith.constant 0 : index
    %c0_0 = arith.constant 0 : index
    %0 = vector.load %arg3[%c0, %c0_0] : memref<16x16xf32, #tpu.memory_space<vmem>>, vector<16x16xf32>
    %c0_1 = arith.constant 0 : index
    %c0_2 = arith.constant 0 : index
    %c0_3 = arith.constant 0 : index
    %1 = vector.load %arg4[%c0_1, %c0_2, %c0_3] : memref<1x16x128xf32, #tpu.memory_space<vmem>>, vector<1x16x128xf32>
    %2 = vector.shape_cast %1 : vector<1x16x128xf32> to vector<16x128xf32>
    %cst = arith.constant dense<0.000000e+00> : vector<16x128xf32>
    %3 = tpu.matmul %0, %2, %cst {dimension_numbers = #tpu.dot_dimension_numbers<[1], [0], [0], [1], [0, 0, 1, 1], [], []>} : vector<16x16xf32>, vector<16x128xf32>, vector<16x128xf32> -> vector<16x128xf32>
    %c0_4 = arith.constant 0 : index
    %c0_5 = arith.constant 0 : index
    %c0_6 = arith.constant 0 : index
    %4 = vector.load %arg5[%c0_4, %c0_5, %c0_6] : memref<1x16x128xf32, #tpu.memory_space<vmem>>, vector<1x16x128xf32>
    %5 = vector.shape_cast %4 : vector<1x16x128xf32> to vector<16x128xf32>
    %6 = vector.shape_cast %3 : vector<16x128xf32> to vector<1x16x128xf32>
    tpu.vector_store %arg5[%c0_4, %c0_5, %c0_6], %6 {strides = array<i32>} : memref<1x16x128xf32, #tpu.memory_space<vmem>>, vector<1x16x128xf32>,
    return
  }
  func.func @transform_0(%arg0: i32, %arg1: i32, %arg2: i32) -> (i32, i32) {
    %c0_i32 = arith.constant 0 : i32
    %c0_i32_0 = arith.constant 0 : i32
    %c0_i32_1 = arith.constant 0 : i32
    return %c0_i32, %c0_i32_0 : i32, i32
  }
  func.func @transform_1(%arg0: i32, %arg1: i32, %arg2: i32) -> (i32, i32, i32) {
    %c0_i32 = arith.constant 0 : i32
    %c0_i32_0 = arith.constant 0 : i32
    return %arg0, %c0_i32, %arg1 : i32, i32, i32
  }
  func.func @transform_2(%arg0: i32, %arg1: i32, %arg2: i32) -> (i32, i32, i32) {
    %c0_i32 = arith.constant 0 : i32
    return %arg0, %arg2, %arg1 : i32, i32, i32
  }
}

</mosaic_0001>

<llo_original>
// kernel: tpu_custom_call.1
$region0: #{tpu_custom_call.1}
  #allocation0 [shape = 'u32[]', space=smem, size = 0x4, offset = 0x4, fixed_abs, tag = 'smem constant byte address 0x4 - core index']
  #allocation1 [shape = 'u32[144,128]{1,0:T(1,128)}', space=vmem, size = 0x12000, scoped, tag = 'internal scratch']
  %s0 = inlined_call_operand.hbm [shape: f32[16,16], index: 0, kind: input, shape index: {}]
  %s1 = inlined_call_operand.hbm [shape: f32[1,16,128], index: 1, kind: input, shape index: {}]
  %s2 = inlined_call_operand.hbm [shape: f32[1,16,128], index: 2, kind: output, shape index: {}]
  %s3 = sld [smem:[#allocation0]]
  $region26: #{tpu_custom_call.1} parent=0
    _
  %s5 = ssub.s32 1, %s3
  %s6 = scalar_select 0, %s5, %s3
  $region1: #{tpu_custom_call.1} parent=0
    #allocation2 [shape = 'u8[8192]{0}', space=vmem, size = 0x2000, scoped, tag = 'input window, operand 0, single buffered']
    #allocation3 [shape = 's32[1]{0}', space=sflag, size = 0x4, scoped, tag = 'scoped memory for tpu_custom_call.1']
    #allocation4 [shape = 's32[1]{0}', space=sflag, size = 0x4, scoped, tag = 'scoped memory for tpu_custom_call.1']
    #allocation5 [shape = 'u8[8192]{0}', space=vmem, size = 0x2000, scoped, tag = 'input window, operand 1, single buffered']
    #allocation6 [shape = 's32[1]{0}', space=sflag, size = 0x4, scoped, tag = 'scoped memory for tpu_custom_call.1']
    #allocation7 [shape = 'u8[8192]{0}', space=vmem, size = 0x2000, scoped, tag = 'output window, operand 0, single buffered']
    %7 = vsyncpa [#allocation3], 0
    %8 = vsyncpa [#allocation6], 0
    %9 = vsyncpa [#allocation4], 0
    // Predicated region
    $region2: #{tpu_custom_call.1} parent=1 // pred_check
      _
    $region3: #{tpu_custom_call.1} parent=1 // pred_check_branch
      %11 = sbr.rel (0) target = $region5
    $region4: #{tpu_custom_call.1} parent=1 // pred_region
      %s13 = ssub.s32 256, 256
      %14 = vsyncadd [#allocation3], %s13
      %s15 = sshll.u32 [#allocation2], 4
      %s16 = int_to_ptr.vmem [resolvable:$true] %s15
      %21 = dma.hbm_to_vmem [thread:$0]  %s0, 256, %s16, [#allocation3], 128, 128, 8
    $region5: #{tpu_custom_call.1} parent=1 // pred_fallthru
      _
    // Predicated region
    $region6: #{tpu_custom_call.1} parent=1 // pred_check
      _
    $region7: #{tpu_custom_call.1} parent=1 // pred_check_branch
      %23 = sbr.rel (0) target = $region9
    $region8: #{tpu_custom_call.1} parent=1 // pred_region
      %s25 = ssub.s32 256, 256
      %26 = vsyncadd [#allocation6], %s25
      %s27 = sshll.u32 [#allocation5], 4
      %s28 = int_to_ptr.vmem [resolvable:$true] %s27
      %33 = dma.hbm_to_vmem [thread:$0]  %s1, 256, %s28, [#allocation6], 128, 128, 8
    $region9: #{tpu_custom_call.1} parent=1 // pred_fallthru
      _
    // Predicated region
    $region10: #{tpu_custom_call.1} parent=1 // pred_check
      _
    $region11: #{tpu_custom_call.1} parent=1 // pred_check_branch
      %35 = sbr.rel (0) target = $region13
    $region12: #{tpu_custom_call.1} parent=1 // pred_region
      %36 = dma.done [#allocation3], 256
    $region13: #{tpu_custom_call.1} parent=1 // pred_fallthru
      _
    // Predicated region
    $region14: #{tpu_custom_call.1} parent=1 // pred_check
      _
    $region15: #{tpu_custom_call.1} parent=1 // pred_check_branch
      %38 = sbr.rel (0) target = $region17
    $region16: #{tpu_custom_call.1} parent=1 // pred_region
      %39 = dma.done [#allocation6], 256
    $region17: #{tpu_custom_call.1} parent=1 // pred_fallthru
      _
    %v40 = vld [vmem:[#allocation2] sm:$0xff]
    %v41 = vld [vmem:[#allocation2 + $0x8] sm:$0xff]
    %v42 = vld [vmem:[#allocation5] sm:$0xff]
    %v43 = vld [vmem:[#allocation5 + $0x8] sm:$0xff]
    %vm44 = vcmask 130048
    %v46 = vsel %vm44, %v40, 0
    %v49 = vsel %vm44, %v41, 0
    %51 = vmatprep.subr.mxu0 0.0
    %52 = vmatpush1.msra.mxu0 %v42
    %53 = vmatprep.subr.mxu0 0.0
    %54 = vmatpush1.msra.mxu0 %v43
    %55 = vmatprep.subr.mxu0 0.0
    %56 = vmatpush1.msra.mxu0 0.0
    %57 = vmatprep.subr.mxu0 0.0
    %58 = vmatpush1.msra.mxu0 0.0
    %59 = vmatprep.subr.mxu0 0.0
    %60 = vmatpush1.msra.mxu0 0.0
    %61 = vmatprep.subr.mxu0 0.0
    %62 = vmatpush1.msra.mxu0 0.0
    %63 = vmatprep.subr.mxu0 0.0
    %64 = vmatpush1.msra.mxu0 0.0
    %65 = vmatprep.subr.mxu0 0.0
    %66 = vmatpush1.msra.mxu0 0.0
    %67 = vmatprep.subr.mxu0 0.0
    %68 = vmatpush1.msra.mxu0 0.0
    %69 = vmatprep.subr.mxu0 0.0
    %70 = vmatpush1.msra.mxu0 0.0
    %71 = vmatprep.subr.mxu0 0.0
    %72 = vmatpush1.msra.mxu0 0.0
    %73 = vmatprep.subr.mxu0 0.0
    %74 = vmatpush1.msra.mxu0 0.0
    %75 = vmatprep.subr.mxu0 0.0
    %76 = vmatpush1.msra.mxu0 0.0
    %77 = vmatprep.subr.mxu0 0.0
    %78 = vmatpush1.msra.mxu0 0.0
    %79 = vmatprep.subr.mxu0 0.0
    %80 = vmatpush1.msra.mxu0 0.0
    %81 = vmatprep.subr.mxu0 0.0
    %82 = vmatpush1.msra.mxu0 0.0
    %83 = vmatprep.subr.mxu0 0.0
    %84 = vmatpush1.msra.mxu0 0.0
    %85 = vmatprep.subr.mxu0 0.0
    %86 = vmatpush1.msra.mxu0 0.0
    %87 = vmatprep.subr.mxu0 0.0
    %88 = vmatpush1.msra.mxu0 0.0
    %89 = vmatprep.subr.mxu0 0.0
    %90 = vmatpush1.msra.mxu0 0.0
    %91 = vmatprep.subr.mxu0 0.0
    %92 = vmatpush1.msra.mxu0 0.0
    %93 = vmatprep.subr.mxu0 0.0
    %94 = vmatpush1.msra.mxu0 0.0
    %95 = vmatprep.subr.mxu0 0.0
    %96 = vmatpush1.msra.mxu0 0.0
    %97 = vmatprep.subr.mxu0 0.0
    %98 = vmatpush1.msra.mxu0 0.0
    %99 = vmatprep.subr.mxu0 0.0
    %100 = vmatpush1.msra.mxu0 0.0
    %101 = vmatprep.subr.mxu0 0.0
    %102 = vmatpush1.msra.mxu0 0.0
    %103 = vmatprep.subr.mxu0 0.0
    %104 = vmatpush1.msra.mxu0 0.0
    %105 = vmatprep.subr.mxu0 0.0
    %106 = vmatpush1.msra.mxu0 0.0
    %107 = vmatprep.subr.mxu0 0.0
    %108 = vmatpush1.msra.mxu0 0.0
    %109 = vmatprep.subr.mxu0 0.0
    %110 = vmatpush1.msra.mxu0 0.0
    %111 = vmatprep.subr.mxu0 0.0
    %112 = vmatpush1.msra.mxu0 0.0
    %113 = vmatprep.subr.mxu0 0.0
    %114 = vmatpush1.msra.mxu0 0.0
    %115 = vmatprep.mubr.f32.mxu0 0.0
    %116 = vmatmul.mubr.f32.gmra.mrb[0].mxu0 %v46
    %v117 = vpop.f32.mrb[0].mxu0
    %v118 = vadd.f32 0.0, %v117
    %v119 = vpop.f32.mrb[0].mxu0
    %120 = vmatprep.mubr.f32.mxu0 0.0
    %121 = vmatmul.mubr.f32.gmra.mrb[0].mxu0 %v49
    %v122 = vpop.f32.mrb[0].mxu0
    %v123 = vadd.f32 0.0, %v122
    %v124 = vpop.f32.mrb[0].mxu0
    %125 = vdwg.mxu0
    %126 = vst [vmem:[#allocation7] sm:$0xff] %v118
    %127 = vst [vmem:[#allocation7 + $0x8] sm:$0xff] %v123
    // Predicated region
    $region18: #{tpu_custom_call.1} parent=1 // pred_check
      _
    $region19: #{tpu_custom_call.1} parent=1 // pred_check_branch
      %129 = sbr.rel (0) target = $region21
    $region20: #{tpu_custom_call.1} parent=1 // pred_region
      %s131 = ssub.s32 256, 256
      %132 = vsyncadd [#allocation4], %s131
      %s133 = sshll.u32 [#allocation7], 4
      %s134 = int_to_ptr.vmem [resolvable:$true] %s133
      %139 = dma.vmem_to_hbm [thread:$0]  %s134, 256, %s2, [#allocation4], 128, 128, 8
    $region21: #{tpu_custom_call.1} parent=1 // pred_fallthru
      _
    // Predicated region
    $region22: #{tpu_custom_call.1} parent=1 // pred_check
      _
    $region23: #{tpu_custom_call.1} parent=1 // pred_check_branch
      %141 = sbr.rel (0) target = $region25
    $region24: #{tpu_custom_call.1} parent=1 // pred_region
      %142 = dma.done [#allocation4], 256
    $region25: #{tpu_custom_call.1} parent=1 // pred_fallthru
      _
    %143 = vsyncpa [#allocation3], 1
    %144 = vsyncpa [#allocation6], 1
    %145 = vsyncpa [#allocation4], 1

</llo_original>
